<compile_context>
chip_gen: v5e
topology: v5e:2x2
jax: 0.10.0
libtpu: 0.0.40
codegen_flags: <defaults>
</compile_context>

<pallas_src>
import functools

import jax
import jax.numpy as jnp
from jax.experimental import pallas as pl
from jax.experimental.pallas import tpu as pltpu

_LANE = 128


def _spike_partial_sum_kernel(z_ref, partial_ref, *, rows, group, need_mask):
    """One grid step: reduce a (tile_rows, W) spike tile to a (group, W) partial sum.

    z_ref       : VMEM (tile_rows, W)  input spike tile (native dtype)
    partial_ref : VMEM (group, W)      per-block partial sums (f32)
    """
    tile_rows, w = z_ref.shape

    def _reduce(zt):
        # (tile_rows, W) -> (tile_rows//group, group, W); the axis-0 sum keeps
        # group*W/1024 independent f32 accumulator vregs, i.e. parallel VPU add
        # chains instead of one serial chain per lane group.
        return jnp.sum(zt.reshape(tile_rows // group, group, w), axis=0)

    if not need_mask:
        partial_ref[...] = _reduce(z_ref[...].astype(jnp.float32))
    else:
        i = pl.program_id(0)
        last = pl.num_programs(0) - 1

        # Fast path: interior blocks pay zero masking cost.
        @pl.when(i != last)
        def _():
            partial_ref[...] = _reduce(z_ref[...].astype(jnp.float32))

        # Only the ragged last block zeroes its out-of-bounds padding rows.
        @pl.when(i == last)
        def _():
            z = z_ref[...].astype(jnp.float32)
            r = jax.lax.broadcasted_iota(jnp.int32, z.shape, 0) + i * tile_rows
            partial_ref[...] = _reduce(jnp.where(r < rows, z, 0.0))


def _input_block_spec(tile_rows, w, grid_b):
    """z BlockSpec; request 3-deep buffering when the grid is long enough."""
    if grid_b >= 3:
        try:
            return pl.BlockSpec((tile_rows, w), lambda i: (i, 0),
                                pipeline_mode=pl.Buffered(3))
        except TypeError:
            pass  # older BlockSpec signature without pipeline_mode
    return pl.BlockSpec((tile_rows, w), lambda i: (i, 0))


def regularization_cell_forward(z, s=None, state=None, *,
                                max_tile_bytes=2 * 1024 * 1024,
                                min_pallas_bytes=256 * 1024):
    """JAX/Pallas equivalent of norse RegularizationCell.forward with the default
    spike_accumulator.  Returns (z, new_state).  `s` (the LIF state) is unused."""
    del s  # default spike_accumulator ignores the neuron state
    if state is None:
        state = jnp.zeros((), jnp.float32)
    state = jnp.asarray(state, jnp.float32)

    total = z.size
    itemsize = z.dtype.itemsize

    # ---- choose a lane-dense 2D view (R, W); the sum is order-insensitive ----
    if total % _LANE == 0:
        view = z.reshape(total // _LANE, _LANE)          # free contiguous re-view
    elif z.ndim >= 2:
        view = z.reshape(-1, z.shape[-1])                # keep last dim as lanes
    else:
        view = z.reshape(1, total)
    R, W = view.shape

    # ---- fast paths: tiny inputs, or shapes the row-tiled kernel can't cover ----
    group = 32 if R >= 32 else 8
    min_tile_bytes = group * W * itemsize
    if (total * itemsize < min_pallas_bytes) or (R < 8) \
            or (min_tile_bytes > 8 * 1024 * 1024):
        # TODO(synk): extreme-W inputs whose total isn't a lane multiple fall back
        # to a plain XLA reduction instead of an H-tiled Pallas kernel.
        return z, state + jnp.sum(z.astype(jnp.float32))

    # f32 spike counting loses exactness past ~2^24 accumulated spikes; keep the
    # running state in higher precision at the framework level if that matters.

    # ---- tiling: largest multiple-of-`group` row tile within the byte budget ----
    rows_budget = max(group, (max_tile_bytes // (W * itemsize)) // group * group)
    full_groups = (R // group) * group                   # >= group since R >= group
    tile_rows = min(rows_budget, full_groups)
    grid_b = pl.cdiv(R, tile_rows)
    need_mask = (R % tile_rows) != 0

    kernel = functools.partial(_spike_partial_sum_kernel,
                               rows=R, group=group, need_mask=need_mask)

    partials = pl.pallas_call(
        kernel,
        out_shape=jax.ShapeDtypeStruct((grid_b, group, W), jnp.float32),
        grid_spec=pltpu.PrefetchScalarGridSpec(
            num_scalar_prefetch=0,
            grid=(grid_b,),
            in_specs=[_input_block_spec(tile_rows, W, grid_b)],
            out_specs=pl.BlockSpec((None, group, W), lambda i: (i, 0, 0)),
        ),
        compiler_params=pltpu.CompilerParams(
            dimension_semantics=("parallel",),           # independent per-block partials
        ),
        cost_estimate=pl.CostEstimate(
            flops=int(R * W),
            transcendentals=0,
            bytes_accessed=int(R * W * itemsize + grid_b * group * W * 4),
        ),
    )(view)

    # Tiny final reduce + running-state add in plain JAX.
    new_state = state + jnp.sum(partials)

    # z pass-through: return the input array directly (no extra HBM traffic).
    return z, new_state


if __name__ == "__main__":
    key = jax.random.PRNGKey(0)
    k1, k2, k3, k4, k5 = jax.random.split(key, 5)

    # Small shapes consistent with the module: (batch, hidden) spike tensors.
    B, H = 16, 128

    # Step 1: default state (None -> 0).  min_pallas_bytes=0 forces the Pallas
    # path even at this small test size (production default would fast-path).
    z1 = (jax.random.uniform(k1, (B, H)) < 0.3).astype(jnp.float32)
    z1_out, st1 = regularization_cell_forward(z1, None, None, min_pallas_bytes=0)

    # Step 2: accumulate on top of the previous state.
    z2 = (jax.random.uniform(k2, (B, H)) < 0.5).astype(jnp.float32)
    z2_out, st2 = regularization_cell_forward(z2, None, st1, min_pallas_bytes=0)

    # Multi-block ragged grid with a narrow (bf16) input; tiny tile budget forces
    # grid_b=3, a masked last block, and the Buffered(3) input path.
    Br, Hr = 72, 128
    z3 = (jax.random.uniform(k3, (Br, Hr)) < 0.4).astype(jnp.bfloat16)
    z3_out, st3 = regularization_cell_forward(
        z3, None, None, max_tile_bytes=32 * 128 * 2, min_pallas_bytes=0)

    # H not a multiple of 128 but total is -> lane-dense flattened (48, 128) view.
    z4 = (jax.random.uniform(k4, (64, 96)) < 0.25).astype(jnp.float32)
    z4_out, st4 = regularization_cell_forward(z4, None, None, min_pallas_bytes=0)

    # Odd shape (neither H nor total a lane multiple) -> (B, H) fallback path.
    z5 = (jax.random.uniform(k5, (10, 60)) < 0.5).astype(jnp.float32)
    z5_out, st5 = regularization_cell_forward(z5, None, None, min_pallas_bytes=0)

    jax.block_until_ready((z1_out, st1, z2_out, st2, z3_out, st3,
                           z4_out, st4, z5_out, st5))

    # Pure-JAX reference check of semantics.
    r1 = jnp.sum(z1)
    r2 = r1 + jnp.sum(z2)
    r3 = jnp.sum(z3.astype(jnp.float32))
    r4 = jnp.sum(z4)
    r5 = jnp.sum(z5)
    assert jnp.array_equal(z1_out, z1), "z pass-through mismatch (1)"
    assert jnp.array_equal(z2_out, z2), "z pass-through mismatch (2)"
    assert jnp.array_equal(z3_out, z3), "z pass-through mismatch (3)"
    assert jnp.array_equal(z4_out, z4), "z pass-through mismatch (4)"
    assert jnp.array_equal(z5_out, z5), "z pass-through mismatch (5)"
    assert jnp.allclose(st1, r1, rtol=1e-6), (st1, r1)
    assert jnp.allclose(st2, r2, rtol=1e-6), (st2, r2)
    assert jnp.allclose(st3, r3, rtol=1e-6), (st3, r3)
    assert jnp.allclose(st4, r4, rtol=1e-6), (st4, r4)
    assert jnp.allclose(st5, r5, rtol=1e-6), (st5, r5)

    print("KERNEL_OK")
</pallas_src>

<mosaic_0001>
module attributes {stable_mosaic.version = 11 : i64} {
  func.func @_spike_partial_sum_kernel(%arg0: i32, %arg1: memref<16x128xf32, #tpu.memory_space<vmem>>, %arg2: memref<1x8x128xf32, #tpu.memory_space<vmem>>) attributes {dimension_semantics = [#tpu.dimension_semantics<parallel>], iteration_bounds = array<i64: 1>, scalar_prefetch = 0 : i64, scratch_operands = 0 : i64, tpu.core_type = #tpu.core_type<tc>, window_params = [{transform_indices = @transform_0, window_bounds = array<i64: 16, 128>}, {transform_indices = @transform_1, window_bounds = array<i64: 1, 8, 128>}]} {
    %c0 = arith.constant 0 : index
    %c0_0 = arith.constant 0 : index
    %0 = vector.load %arg1[%c0, %c0_0] : memref<16x128xf32, #tpu.memory_space<vmem>>, vector<16x128xf32>
    %1 = vector.shape_cast %0 : vector<16x128xf32> to vector<2x8x128xf32>
    %cst = arith.constant dense<0.000000e+00> : vector<8x128xf32>
    %2 = vector.multi_reduction <add>, %1, %cst [0] : vector<2x8x128xf32> to vector<8x128xf32>
    %c0_1 = arith.constant 0 : index
    %c0_2 = arith.constant 0 : index
    %c0_3 = arith.constant 0 : index
    %3 = vector.load %arg2[%c0_1, %c0_2, %c0_3] : memref<1x8x128xf32, #tpu.memory_space<vmem>>, vector<1x8x128xf32>
    %4 = vector.shape_cast %3 : vector<1x8x128xf32> to vector<8x128xf32>
    %5 = vector.shape_cast %2 : vector<8x128xf32> to vector<1x8x128xf32>
    tpu.vector_store %arg2[%c0_1, %c0_2, %c0_3], %5 {strides = array<i32>} : memref<1x8x128xf32, #tpu.memory_space<vmem>>, vector<1x8x128xf32>,
    return
  }
  func.func @transform_0(%arg0: i32) -> (i32, i32) {
    %c0_i32 = arith.constant 0 : i32
    %c0_i32_0 = arith.constant 0 : i32
    return %arg0, %c0_i32 : i32, i32
  }
  func.func @transform_1(%arg0: i32) -> (i32, i32, i32) {
    %c0_i32 = arith.constant 0 : i32
    %c0_i32_0 = arith.constant 0 : i32
    %c0_i32_1 = arith.constant 0 : i32
    return %arg0, %c0_i32, %c0_i32_0 : i32, i32, i32
  }
}

</mosaic_0001>

<llo_original>
// kernel: tpu_custom_call.1
$region0: #{tpu_custom_call.1}
  #allocation0 [shape = 'u32[]', space=smem, size = 0x4, offset = 0x4, fixed_abs, tag = 'smem constant byte address 0x4 - core index']
  #allocation1 [shape = 'u32[72,128]{1,0:T(1,128)}', space=vmem, size = 0x9000, scoped, tag = 'internal scratch']
  %s0 = inlined_call_operand.hbm [shape: f32[16,128], index: 0, kind: input, shape index: {}]
  %s1 = inlined_call_operand.hbm [shape: f32[1,8,128], index: 1, kind: output, shape index: {}]
  %s2 = sld [smem:[#allocation0]]
  $region18: #{tpu_custom_call.1} parent=0
    _
  %s4 = ssub.s32 1, %s2
  %s5 = scalar_select 0, %s4, %s2
  $region1: #{tpu_custom_call.1} parent=0
    #allocation2 [shape = 'u8[8192]{0}', space=vmem, size = 0x2000, scoped, tag = 'input window, operand 0, single buffered']
    #allocation3 [shape = 's32[1]{0}', space=sflag, size = 0x4, scoped, tag = 'scoped memory for tpu_custom_call.1']
    #allocation4 [shape = 's32[1]{0}', space=sflag, size = 0x4, scoped, tag = 'scoped memory for tpu_custom_call.1']
    #allocation5 [shape = 'u8[4096]{0}', space=vmem, size = 0x1000, scoped, tag = 'output window, operand 0, single buffered']
    %6 = vsyncpa [#allocation3], 0
    %7 = vsyncpa [#allocation4], 0
    // Predicated region
    $region2: #{tpu_custom_call.1} parent=1 // pred_check
      _
    $region3: #{tpu_custom_call.1} parent=1 // pred_check_branch
      %9 = sbr.rel (0) target = $region5
    $region4: #{tpu_custom_call.1} parent=1 // pred_region
      %11 = vsyncadd [#allocation3], 0
      %s12 = sshll.u32 %s0, 4
      %s13 = int_to_ptr.hbm [resolvable:$true] %s12
      %s14 = sshll.u32 [#allocation2], 4
      %s15 = int_to_ptr.vmem [resolvable:$true] %s14
      %20 = dma.hbm_to_vmem [thread:$0]  %s13, 256, %s15, [#allocation3], 128, 128, 8
    $region5: #{tpu_custom_call.1} parent=1 // pred_fallthru
      _
    // Predicated region
    $region6: #{tpu_custom_call.1} parent=1 // pred_check
      _
    $region7: #{tpu_custom_call.1} parent=1 // pred_check_branch
      %22 = sbr.rel (0) target = $region9
    $region8: #{tpu_custom_call.1} parent=1 // pred_region
      %24 = dma.done [#allocation3], 256
    $region9: #{tpu_custom_call.1} parent=1 // pred_fallthru
      _
    %v25 = vld [vmem:[#allocation2] sm:$0xff]
    %v26 = vld [vmem:[#allocation2 + $0x8] sm:$0xff]
    %v27 = vadd.f32 %v25, %v26
    %28 = vst [vmem:[#allocation5] sm:$0xff] %v27
    // Predicated region
    $region10: #{tpu_custom_call.1} parent=1 // pred_check
      _
    $region11: #{tpu_custom_call.1} parent=1 // pred_check_branch
      %30 = sbr.rel (0) target = $region13
    $region12: #{tpu_custom_call.1} parent=1 // pred_region
      %32 = vsyncadd [#allocation4], 0
      %s34 = sshll.u32 [#allocation5], 4
      %s35 = int_to_ptr.vmem [resolvable:$true] %s34
      %s36 = sshll.u32 %s1, 4
      %s37 = int_to_ptr.hbm [resolvable:$true] %s36
      %39 = dma.vmem_to_hbm [thread:$0]  %s35, 128, %s37, [#allocation4]
    $region13: #{tpu_custom_call.1} parent=1 // pred_fallthru
      _
    // Predicated region
    $region14: #{tpu_custom_call.1} parent=1 // pred_check
      _
    $region15: #{tpu_custom_call.1} parent=1 // pred_check_branch
      %41 = sbr.rel (0) target = $region17
    $region16: #{tpu_custom_call.1} parent=1 // pred_region
      %43 = dma.done [#allocation4], 128
    $region17: #{tpu_custom_call.1} parent=1 // pred_fallthru
      _
    %44 = vsyncpa [#allocation3], 1
    %45 = vsyncpa [#allocation4], 1

</llo_original>
